<compile_context>
chip_gen: v7x
topology: tpu7x:2x2x1
jax: 0.10.0
libtpu: 0.0.40
codegen_flags: <defaults>
</compile_context>

<pallas_src>
import numpy as np
import jax
import jax.numpy as jnp
from jax import lax
from jax.experimental import pallas as pl
from jax.experimental.pallas import tpu as pltpu

HIDDEN = 32
VOCAB = 50
MAX_LEN = 16

D_PAD = 128     # hidden padded to the 128-lane width
N_PAD = 128     # class dim padded to the 128-lane width (lane-dense output)
ROW_MULT = 8    # sublane multiple for the token axes


# ----------------------------- Pallas kernel ------------------------------ #
def _proto_dist_kernel(sup_ref, ohn_ref, q_ref, out_ref):
    """One episode per grid step.

    sup_ref : [Ts, D]  support-token embeddings (invalid/pad rows zeroed)
    ohn_ref : [Ts, N]  one-hot labels divided by class count (mean via matmul)
    q_ref   : [Tq, D]  query-token embeddings (invalid/pad rows zeroed)
    out_ref : [Tq, N]  -||q - proto_n||^2  (padded class columns hold -|q|^2
                       and are masked to -inf by the caller)
    """
    sup = sup_ref[...]
    ohn = ohn_ref[...]
    q = q_ref[...]

    # prototypes, transposed: protoT[d, n] = mean_{t in class n} sup[t, d]
    protoT = lax.dot_general(sup, ohn, (((0,), (0,)), ((), ())),
                             preferred_element_type=jnp.float32)       # [D, N]
    # cross term q . proto (contraction over the full 128-lane hidden dim)
    cross = lax.dot_general(q, protoT, (((1,), (0,)), ((), ())),
                            preferred_element_type=jnp.float32)        # [Tq, N]
    q_sq = jnp.sum(q * q, axis=1, keepdims=True)                       # [Tq, 1]
    p_sq = jnp.sum(protoT * protoT, axis=0, keepdims=True)             # [1, N]
    # -||q - p||^2 = 2 q.p - ||q||^2 - ||p||^2   (all f32)
    out_ref[...] = 2.0 * cross - q_sq - p_sq


def proto_dist(sup_tok, oh_norm, q_tok):
    """sup_tok [E,Ts,D], oh_norm [E,Ts,N], q_tok [E,Tq,D] -> logits [E,Tq,N]."""
    E, Ts, D = sup_tok.shape
    Tq = q_tok.shape[1]
    N = oh_norm.shape[2]
    return pl.pallas_call(
        _proto_dist_kernel,
        out_shape=jax.ShapeDtypeStruct((E, Tq, N), jnp.float32),
        grid=(E,),
        in_specs=[pl.BlockSpec((None, Ts, D), lambda e: (e, 0, 0)),
                  pl.BlockSpec((None, Ts, N), lambda e: (e, 0, 0)),
                  pl.BlockSpec((None, Tq, D), lambda e: (e, 0, 0))],
        out_specs=pl.BlockSpec((None, Tq, N), lambda e: (e, 0, 0)),
        compiler_params=pltpu.CompilerParams(
            dimension_semantics=("parallel",)),   # v7x: shard episodes over 2 TCs
    )(sup_tok, oh_norm, q_tok)


# --------------------------- jitted device core ---------------------------- #
@jax.jit
def _token_proto_core(word_table, sup_word, q_word,
                      sup_idx, sup_valid, sup_labels,
                      q_idx, q_valid, class_valid):
    D = word_table.shape[1]
    # TODO(synk): word_encoder is supplied externally (e.g. BERT); stand-in is
    # a deterministic token-embedding lookup. nn.Dropout() is identity (eval).
    sup_emb = word_table[sup_word].reshape(-1, D)        # [S_sup*L, D]
    q_emb = word_table[q_word].reshape(-1, D)            # [S_q*L, D]

    # masked-select replaced by device gather + multiply-by-mask (static shapes)
    sup_tok = sup_emb[sup_idx] * sup_valid[..., None]    # [E, Ts, D]
    q_tok = q_emb[q_idx] * q_valid[..., None]            # [E, Tq, D]

    # zero-pad hidden to the 128-lane width (pad dims contribute 0 everywhere)
    sup_tok = jnp.pad(sup_tok, ((0, 0), (0, 0), (0, D_PAD - D)))
    q_tok = jnp.pad(q_tok, ((0, 0), (0, 0), (0, D_PAD - D)))

    # normalized one-hot: column n sums to 1 (0 for empty / padded classes),
    # so the in-kernel matmul directly yields the class-mean prototype.
    onehot = jax.nn.one_hot(sup_labels, N_PAD, dtype=jnp.float32)
    onehot = onehot * sup_valid[..., None]
    cnt = jnp.sum(onehot, axis=1, keepdims=True)         # [E, 1, N]
    oh_norm = onehot / jnp.maximum(cnt, 1.0)             # guard empty classes

    logits = proto_dist(sup_tok, oh_norm, q_tok)         # [E, Tq, N_PAD]
    # padded / absent class columns -> -inf so argmax never picks them
    logits = jnp.where(class_valid[:, None, :] > 0, logits, -jnp.inf)
    return logits


# ------------------------- host metadata -> layout ------------------------- #
def _build_layout(sentence_num, text_mask, labels=None):
    """Build static per-episode gather indices / validity masks / labels."""
    L = text_mask.shape[1]
    ep_idx, ep_lab, ep_cnt = [], [], []
    cs = 0
    for n_sent in sentence_num:
        idxs, labs = [], []
        for j in range(cs, cs + n_sent):
            pos = np.nonzero(text_mask[j])[0]
            idxs.append(j * L + pos)
            if labels is not None:
                lab = np.asarray(labels[j])
                assert lab.shape[0] == pos.shape[0]
                labs.append(lab)
        flat = np.concatenate(idxs) if idxs else np.zeros((0,), np.int64)
        ep_idx.append(flat)
        ep_cnt.append(int(flat.shape[0]))
        if labels is not None:
            ep_lab.append(np.concatenate(labs))
        cs += n_sent

    E = len(sentence_num)
    T_max = max(max(ep_cnt), 1)
    T_max = int(-(-T_max // ROW_MULT) * ROW_MULT)        # pad to sublane multiple
    idx_arr = np.zeros((E, T_max), np.int32)
    valid_arr = np.zeros((E, T_max), np.float32)
    lab_arr = np.zeros((E, T_max), np.int32)
    for e in range(E):
        n = ep_cnt[e]
        idx_arr[e, :n] = ep_idx[e]
        valid_arr[e, :n] = 1.0
        if labels is not None:
            lab_arr[e, :n] = ep_lab[e]
    return idx_arr, valid_arr, lab_arr, ep_cnt


# ---------------------------- TokenProto (JAX) ----------------------------- #
class TokenProtoJax:
    def __init__(self, hidden_size, vocab_size, key, dot=False):
        self.hidden_size = hidden_size
        self.dot = dot                 # False => -||x - y||^2 (proto-net default)
        self.max_length = 64
        self.margin_distance = 6.0
        k1, k2, k3 = jax.random.split(key, 3)
        # Parameters declared by the PyTorch __init__ (deterministic init).
        # TODO(synk): projector / tag_embeddings are declared in __init__ but
        # never used by forward(); kept only for parameter parity.
        self.proj_w = 0.02 * jax.random.normal(k1, (hidden_size, hidden_size), jnp.float32)
        self.proj_b = jnp.zeros((hidden_size,), jnp.float32)
        self.tag_embeddings = 0.02 * jax.random.normal(k2, (2, hidden_size), jnp.float32)
        self.word_table = jax.random.normal(k3, (vocab_size, hidden_size), jnp.float32)

    def word_encoder(self, word, mask):
        return self.word_table[word]                      # [S, L, D]

    def forward(self, support, query):
        # Host side: only metadata (sentence_num / text_mask / labels) is read;
        # no embedding data crosses the host boundary.
        sup_tmask = np.asarray(support['text_mask'])
        q_tmask = np.asarray(query['text_mask'])
        sup_idx, sup_valid, sup_labels, _ = _build_layout(
            support['sentence_num'], sup_tmask, support['label'])
        q_idx, q_valid, _, q_counts = _build_layout(
            query['sentence_num'], q_tmask, None)

        E = len(support['sentence_num'])
        n_classes, cs = [], 0
        for n_sup in support['sentence_num']:
            tags = np.concatenate(
                [np.asarray(t) for t in support['label'][cs:cs + n_sup]], 0)
            n_classes.append(int(tags.max()) + 1)
            cs += n_sup
        class_valid = np.zeros((E, N_PAD), np.float32)
        for e in range(E):
            class_valid[e, :n_classes[e]] = 1.0

        logits_pad = _token_proto_core(
            self.word_table, support['word'], query['word'],
            jnp.asarray(sup_idx), jnp.asarray(sup_valid), jnp.asarray(sup_labels),
            jnp.asarray(q_idx), jnp.asarray(q_valid), jnp.asarray(class_valid))

        # Per-episode exact logits (static, host-known slices) + torch.cat-like
        # concatenation over valid query tokens (padded classes are -inf).
        max_n = max(n_classes)
        logits_all = [logits_pad[e, :q_counts[e], :n_classes[e]] for e in range(E)]
        logits_cat = jnp.concatenate(
            [logits_pad[e, :q_counts[e], :max_n] for e in range(E)], axis=0)
        pred = jnp.argmax(logits_cat, axis=1)
        return {'loss': None, 'logits': logits_all,
                'logits_cat': logits_cat, 'pred': pred}


# --------------------------------- main ------------------------------------ #
def _numpy_reference(sup_tokens, tags, q_tokens):
    n_classes = int(tags.max()) + 1
    proto = np.stack([sup_tokens[tags == c].mean(0) for c in range(n_classes)])
    diff = q_tokens[:, None, :] - proto[None, :, :]
    return -(diff ** 2).sum(-1)


if __name__ == "__main__":
    key = jax.random.PRNGKey(0)
    k_model, _ = jax.random.split(key)
    model = TokenProtoJax(HIDDEN, VOCAB, k_model)

    rng = np.random.RandomState(0)

    # 2 episodes; support sentences per episode = [2, 2]; query = [1, 2]
    sup_lens = [10, 8, 12, 6]
    q_lens = [9, 7, 5]

    def make_sents(lens):
        S = len(lens)
        word = rng.randint(0, VOCAB, size=(S, MAX_LEN)).astype(np.int32)
        text_mask = np.zeros((S, MAX_LEN), np.int32)
        for j, l in enumerate(lens):
            text_mask[j, :l] = 1
        mask = np.ones((S, MAX_LEN), np.int32)
        return word, mask, text_mask

    sup_word, sup_mask, sup_tmask = make_sents(sup_lens)
    q_word, q_mask, q_tmask = make_sents(q_lens)

    # labels: per-sentence arrays over valid tokens; episode 0 has 3 classes,
    # episode 1 has 2 classes.
    sup_labels = [
        (np.arange(sup_lens[0]) % 3).astype(np.int32),
        (np.arange(sup_lens[1]) % 3).astype(np.int32),
        (np.arange(sup_lens[2]) % 2).astype(np.int32),
        (np.arange(sup_lens[3]) % 2).astype(np.int32),
    ]

    support = {'word': jnp.asarray(sup_word), 'mask': jnp.asarray(sup_mask),
               'text_mask': sup_tmask, 'label': sup_labels,
               'sentence_num': [2, 2]}
    query = {'word': jnp.asarray(q_word), 'mask': jnp.asarray(q_mask),
             'text_mask': q_tmask, 'label': None,
             'sentence_num': [1, 2]}

    out = model.forward(support, query)
    jax.block_until_ready(out['logits_cat'])

    # correctness check against a pure-numpy reference of the torch semantics
    table = np.asarray(model.word_table)
    cs, cq = 0, 0
    ok = True
    for i, n_sup in enumerate(support['sentence_num']):
        n_q = query['sentence_num'][i]
        emb = table[sup_word[cs:cs + n_sup]].reshape(-1, HIDDEN)
        st = emb[sup_tmask[cs:cs + n_sup].reshape(-1) == 1]
        tg = np.concatenate(sup_labels[cs:cs + n_sup], 0)
        qe = table[q_word[cq:cq + n_q]].reshape(-1, HIDDEN)
        qt = qe[q_tmask[cq:cq + n_q].reshape(-1) == 1]
        ref = _numpy_reference(st, tg, qt)
        got = np.asarray(out['logits'][i])
        ok = ok and (ref.shape == got.shape) and np.allclose(ref, got, rtol=1e-3, atol=1e-2)
        cs += n_sup
        cq += n_q

    if not ok:
        raise AssertionError("Pallas kernel does not match reference")
    print("KERNEL_OK")
</pallas_src>

<mosaic_0001>
module attributes {stable_mosaic.version = 11 : i64} {
  func.func @_proto_dist_kernel(%arg0: i32, %arg1: memref<1x24x128xf32, #tpu.memory_space<vmem>>, %arg2: memref<1x24x128xf32, #tpu.memory_space<vmem>>, %arg3: memref<1x16x128xf32, #tpu.memory_space<vmem>>, %arg4: memref<1x16x128xf32, #tpu.memory_space<vmem>>) attributes {dimension_semantics = [#tpu.dimension_semantics<parallel>], iteration_bounds = array<i64: 2>, scalar_prefetch = 0 : i64, scratch_operands = 0 : i64, tpu.core_type = #tpu.core_type<tc>, window_params = [{transform_indices = @transform_0, window_bounds = array<i64: 1, 24, 128>}, {transform_indices = @transform_1, window_bounds = array<i64: 1, 24, 128>}, {transform_indices = @transform_2, window_bounds = array<i64: 1, 16, 128>}, {transform_indices = @transform_3, window_bounds = array<i64: 1, 16, 128>}]} {
    %c0 = arith.constant 0 : index
    %c0_0 = arith.constant 0 : index
    %c0_1 = arith.constant 0 : index
    %0 = vector.load %arg1[%c0, %c0_0, %c0_1] : memref<1x24x128xf32, #tpu.memory_space<vmem>>, vector<1x24x128xf32>
    %1 = vector.shape_cast %0 : vector<1x24x128xf32> to vector<24x128xf32>
    %c0_2 = arith.constant 0 : index
    %c0_3 = arith.constant 0 : index
    %c0_4 = arith.constant 0 : index
    %2 = vector.load %arg2[%c0_2, %c0_3, %c0_4] : memref<1x24x128xf32, #tpu.memory_space<vmem>>, vector<1x24x128xf32>
    %3 = vector.shape_cast %2 : vector<1x24x128xf32> to vector<24x128xf32>
    %c0_5 = arith.constant 0 : index
    %c0_6 = arith.constant 0 : index
    %c0_7 = arith.constant 0 : index
    %4 = vector.load %arg3[%c0_5, %c0_6, %c0_7] : memref<1x16x128xf32, #tpu.memory_space<vmem>>, vector<1x16x128xf32>
    %5 = vector.shape_cast %4 : vector<1x16x128xf32> to vector<16x128xf32>
    %cst = arith.constant dense<0.000000e+00> : vector<128x128xf32>
    %6 = tpu.matmul %1, %3, %cst {dimension_numbers = #tpu.dot_dimension_numbers<[0], [0], [1], [1], [0, 1, 1, 1], [], []>} : vector<24x128xf32>, vector<24x128xf32>, vector<128x128xf32> -> vector<128x128xf32>
    %cst_8 = arith.constant dense<0.000000e+00> : vector<16x128xf32>
    %7 = tpu.matmul %5, %6, %cst_8 {dimension_numbers = #tpu.dot_dimension_numbers<[1], [0], [0], [1], [0, 0, 1, 1], [], []>} : vector<16x128xf32>, vector<128x128xf32>, vector<16x128xf32> -> vector<16x128xf32>
    %8 = arith.mulf %5, %5 : vector<16x128xf32>
    %cst_9 = arith.constant dense<0.000000e+00> : vector<16xf32>
    %9 = vector.multi_reduction <add>, %8, %cst_9 [1] : vector<16x128xf32> to vector<16xf32>
    %10 = vector.shape_cast %9 : vector<16xf32> to vector<16x1xf32>
    %11 = arith.mulf %6, %6 : vector<128x128xf32>
    %cst_10 = arith.constant dense<0.000000e+00> : vector<128xf32>
    %12 = vector.multi_reduction <add>, %11, %cst_10 [0] : vector<128x128xf32> to vector<128xf32>
    %13 = vector.shape_cast %12 : vector<128xf32> to vector<1x128xf32>
    %cst_11 = arith.constant 2.000000e+00 : f32
    %14 = vector.broadcast %cst_11 : f32 to vector<16x128xf32>
    %15 = arith.mulf %14, %7 : vector<16x128xf32>
    %16 = vector.broadcast %10 : vector<16x1xf32> to vector<16x128xf32>
    %17 = arith.subf %15, %16 : vector<16x128xf32>
    %18 = vector.broadcast %13 : vector<1x128xf32> to vector<16x128xf32>
    %19 = arith.subf %17, %18 : vector<16x128xf32>
    %c0_12 = arith.constant 0 : index
    %c0_13 = arith.constant 0 : index
    %c0_14 = arith.constant 0 : index
    %20 = vector.load %arg4[%c0_12, %c0_13, %c0_14] : memref<1x16x128xf32, #tpu.memory_space<vmem>>, vector<1x16x128xf32>
    %21 = vector.shape_cast %20 : vector<1x16x128xf32> to vector<16x128xf32>
    %22 = vector.shape_cast %19 : vector<16x128xf32> to vector<1x16x128xf32>
    tpu.vector_store %arg4[%c0_12, %c0_13, %c0_14], %22 {strides = array<i32>} : memref<1x16x128xf32, #tpu.memory_space<vmem>>, vector<1x16x128xf32>,
    return
  }
  func.func @transform_0(%arg0: i32) -> (i32, i32, i32) {
    %c0_i32 = arith.constant 0 : i32
    %c0_i32_0 = arith.constant 0 : i32
    %c0_i32_1 = arith.constant 0 : i32
    return %arg0, %c0_i32, %c0_i32_0 : i32, i32, i32
  }
  func.func @transform_1(%arg0: i32) -> (i32, i32, i32) {
    %c0_i32 = arith.constant 0 : i32
    %c0_i32_0 = arith.constant 0 : i32
    %c0_i32_1 = arith.constant 0 : i32
    return %arg0, %c0_i32, %c0_i32_0 : i32, i32, i32
  }
  func.func @transform_2(%arg0: i32) -> (i32, i32, i32) {
    %c0_i32 = arith.constant 0 : i32
    %c0_i32_0 = arith.constant 0 : i32
    %c0_i32_1 = arith.constant 0 : i32
    return %arg0, %c0_i32, %c0_i32_0 : i32, i32, i32
  }
  func.func @transform_3(%arg0: i32) -> (i32, i32, i32) {
    %c0_i32 = arith.constant 0 : i32
    %c0_i32_0 = arith.constant 0 : i32
    %c0_i32_1 = arith.constant 0 : i32
    return %arg0, %c0_i32, %c0_i32_0 : i32, i32, i32
  }
}

</mosaic_0001>

<llo_original>
// kernel: _token_proto_core.1
$region0: #{_token_proto_core.1}
  #allocation0 [shape = 'u32[]', space=smem, size = 0x4, offset = 0x4, fixed_abs, tag = 'smem constant byte address 0x4 - core index']
  #allocation1 [shape = 'u32[144,128]{1,0:T(1,128)}', space=vmem, size = 0x12000, scoped, tag = 'internal scratch']
  %s0 = inlined_call_operand.vmem [shape: f32[2,24,128], index: 0, kind: input, shape index: {}]
  %s1 = inlined_call_operand.vmem [shape: f32[2,24,128], index: 1, kind: input, shape index: {}]
  %s2 = inlined_call_operand.vmem [shape: f32[2,16,128], index: 2, kind: input, shape index: {}]
  %s3 = inlined_call_operand.vmem [shape: f32[2,16,128], index: 3, kind: output, shape index: {}]
  %s4 = sld [smem:[#allocation0]]
  $region45: #{_token_proto_core.1} parent=0
    _
  %s6 = ssub.s32 1, %s4
  %s7 = scalar_select 0, %s6, %s4
  loop: start=0, step=1, limit=4
  $region2: #{_token_proto_core.1} parent=0 // loop_pre_header
    _
  $region3: #{_token_proto_core.1} parent=0 // loop_header
    %s9 = sphi 0, %s13
    %p10 = scmp.ge.s32.totalorder %s9, 4
    %s19 = sphi 0, %s21
    %s22 = sphi 0, %s19
    %s23 = sphi 0, %s22
    %s39 = sphi 0, %s23
    %s45 = sphi 0, %s47
    %s48 = sphi 0, %s45
    %s49 = sphi 0, %s48
    %s65 = sphi 0, %s49
    %s71 = sphi 0, %s73
    %s74 = sphi 0, %s71
    %s75 = sphi 0, %s74
    %s91 = sphi 0, %s75
    %s97 = sphi 0, %s99
    %s100 = sphi 0, %s97
    %s101 = sphi 0, %s100
    %s117 = sphi 0, %s101
  $region4: #{_token_proto_core.1} parent=0 // loop_header_branch
    %12 = sbr.rel (%p10) target = $region8
  $region5: #{_token_proto_core.1} parent=0 // loop_body
    %s14 = ssub.s32 %s9, 1
    %s15 = ssub.s32 %s9, 2
    %s16 = sadd.s32 %s9, 1
    %s17 = ssub.s32 %s9, %s16
    %p18 = scmp.eq.s32.totalorder %s17, 0
    %s20 = sadd.s32 %s19, 1
    %s21 = scalar_select %p18, %s19, %s20
    %p24 = pneg %p18
    %p25 = scmp.eq.s32.totalorder %s9, 1
    %p26 = por %p24, %p25
    %p27 = scmp.ne.s32.totalorder %s19, %s22
    %p28 = scmp.eq.s32.totalorder %s9, 0
    %p29 = por %p27, %p28
    %p30 = scmp.ne.s32.totalorder %s19, %s22
    %p31 = scmp.eq.s32.totalorder %s14, 1
    %p32 = por %p30, %p31
    %p33 = scmp.ne.s32.totalorder %s22, %s23
    %p34 = scmp.eq.s32.totalorder %s14, 0
    %p35 = por %p33, %p34
    %p36 = scmp.ne.s32.totalorder %s22, %s23
    %p37 = scmp.eq.s32.totalorder %s15, 1
    %p38 = por %p36, %p37
    %p40 = scmp.ne.s32.totalorder %s23, %s39
    %p41 = scmp.eq.s32.totalorder %s15, 0
    %p42 = por %p40, %p41
    %s43 = ssub.s32 %s9, %s16
    %p44 = scmp.eq.s32.totalorder %s43, 0
    %s46 = sadd.s32 %s45, 1
    %s47 = scalar_select %p44, %s45, %s46
    %p50 = pneg %p44
    %p51 = scmp.eq.s32.totalorder %s9, 1
    %p52 = por %p50, %p51
    %p53 = scmp.ne.s32.totalorder %s45, %s48
    %p54 = scmp.eq.s32.totalorder %s9, 0
    %p55 = por %p53, %p54
    %p56 = scmp.ne.s32.totalorder %s45, %s48
    %p57 = scmp.eq.s32.totalorder %s14, 1
    %p58 = por %p56, %p57
    %p59 = scmp.ne.s32.totalorder %s48, %s49
    %p60 = scmp.eq.s32.totalorder %s14, 0
    %p61 = por %p59, %p60
    %p62 = scmp.ne.s32.totalorder %s48, %s49
    %p63 = scmp.eq.s32.totalorder %s15, 1
    %p64 = por %p62, %p63
    %p66 = scmp.ne.s32.totalorder %s49, %s65
    %p67 = scmp.eq.s32.totalorder %s15, 0
    %p68 = por %p66, %p67
    %s69 = ssub.s32 %s9, %s16
    %p70 = scmp.eq.s32.totalorder %s69, 0
    %s72 = sadd.s32 %s71, 1
    %s73 = scalar_select %p70, %s71, %s72
    %p76 = pneg %p70
    %p77 = scmp.eq.s32.totalorder %s9, 1
    %p78 = por %p76, %p77
    %p79 = scmp.ne.s32.totalorder %s71, %s74
    %p80 = scmp.eq.s32.totalorder %s9, 0
    %p81 = por %p79, %p80
    %p82 = scmp.ne.s32.totalorder %s71, %s74
    %p83 = scmp.eq.s32.totalorder %s14, 1
    %p84 = por %p82, %p83
    %p85 = scmp.ne.s32.totalorder %s74, %s75
    %p86 = scmp.eq.s32.totalorder %s14, 0
    %p87 = por %p85, %p86
    %p88 = scmp.ne.s32.totalorder %s74, %s75
    %p89 = scmp.eq.s32.totalorder %s15, 1
    %p90 = por %p88, %p89
    %p92 = scmp.ne.s32.totalorder %s75, %s91
    %p93 = scmp.eq.s32.totalorder %s15, 0
    %p94 = por %p92, %p93
    %s95 = ssub.s32 %s9, %s16
    %p96 = scmp.eq.s32.totalorder %s95, 0
    %s98 = sadd.s32 %s97, 1
    %s99 = scalar_select %p96, %s97, %s98
    %p102 = pneg %p96
    %p103 = scmp.eq.s32.totalorder %s9, 1
    %p104 = por %p102, %p103
    %p105 = scmp.ne.s32.totalorder %s97, %s100
    %p106 = scmp.eq.s32.totalorder %s9, 0
    %p107 = por %p105, %p106
    %p108 = scmp.ne.s32.totalorder %s97, %s100
    %p109 = scmp.eq.s32.totalorder %s14, 1
    %p110 = por %p108, %p109
    %p111 = scmp.ne.s32.totalorder %s100, %s101
    %p112 = scmp.eq.s32.totalorder %s14, 0
    %p113 = por %p111, %p112
    %p114 = scmp.ne.s32.totalorder %s100, %s101
    %p115 = scmp.eq.s32.totalorder %s15, 1
    %p116 = por %p114, %p115
    %p118 = scmp.ne.s32.totalorder %s101, %s117
    %p119 = scmp.eq.s32.totalorder %s15, 0
    %p120 = por %p118, %p119
    %p121 = scmp.le.s32.totalorder 1, %s9
    %p122 = scmp.lt.s32.totalorder %s9, 3
    %p123 = pnand %p121, %p122
    %p124 = pneg %p123
    // Predicated region
    $region9: #{_token_proto_core.1} parent=5 // pred_check
      _
    $region10: #{_token_proto_core.1} parent=5 // pred_check_branch
      %126 = sbr.rel (%p123) target = $region12
    $region11: #{_token_proto_core.1} parent=5 // pred_region
      %s127 = ssub.s32 %s9, 1
    $region12: #{_token_proto_core.1} parent=5 // pred_fallthru
      _
    %p128 = scmp.lt.s32.totalorder %s9, 2
    // Predicated region
    $region13: #{_token_proto_core.1} parent=5 // pred_check
      %p129 = pneg %p128
    $region14: #{_token_proto_core.1} parent=5 // pred_check_branch
      %131 = sbr.rel (%p129) target = $region16
    $region15: #{_token_proto_core.1} parent=5 // pred_region
      // Predicated region
      $region17: #{_token_proto_core.1} parent=15 // pred_check
        %p132 = pneg %p29
      $region18: #{_token_proto_core.1} parent=15 // pred_check_branch
        %134 = sbr.rel (%p132) target = $region20
      $region19: #{_token_proto_core.1} parent=15 // pred_region
        %p135 = scmp.lt.s32.totalorder %s9, 1
        %s136 = scalar_select %p135, %s9, 1
        %s137 = smul.addr %s136, 3
        %s138 = smul.addr %s137, 8
        %s139 = scalar_lea.vmem %s0, %s138
      $region20: #{_token_proto_core.1} parent=15 // pred_fallthru
        _
      // Predicated region
      $region21: #{_token_proto_core.1} parent=15 // pred_check
        %p140 = pneg %p55
      $region22: #{_token_proto_core.1} parent=15 // pred_check_branch
        %142 = sbr.rel (%p140) target = $region24
      $region23: #{_token_proto_core.1} parent=15 // pred_region
        %p143 = scmp.lt.s32.totalorder %s9, 1
        %s144 = scalar_select %p143, %s9, 1
        %s145 = smul.addr %s144, 3
        %s146 = smul.addr %s145, 8
        %s147 = scalar_lea.vmem %s1, %s146
      $region24: #{_token_proto_core.1} parent=15 // pred_fallthru
        _
      // Predicated region
      $region25: #{_token_proto_core.1} parent=15 // pred_check
        %p148 = pneg %p81
      $region26: #{_token_proto_core.1} parent=15 // pred_check_branch
        %150 = sbr.rel (%p148) target = $region28
      $region27: #{_token_proto_core.1} parent=15 // pred_region
        %p151 = scmp.lt.s32.totalorder %s9, 1
        %s152 = scalar_select %p151, %s9, 1
        %s153 = smul.addr %s152, 2
        %s154 = smul.addr %s153, 8
        %s155 = scalar_lea.vmem %s2, %s154
      $region28: #{_token_proto_core.1} parent=15 // pred_fallthru
        _
    $region16: #{_token_proto_core.1} parent=5 // pred_fallthru
      _
    %p156 = scmp.le.s32.totalorder 1, %s9
    %p157 = scmp.lt.s32.totalorder %s9, 3
    %p158 = pnand %p156, %p157
    %p159 = pneg %p158
    // Predicated region
    $region29: #{_token_proto_core.1} parent=5 // pred_check
      _
    $region30: #{_token_proto_core.1} parent=5 // pred_check_branch
      %161 = sbr.rel (%p158) target = $region32
    $region31: #{_token_proto_core.1} parent=5 // pred_region
      %s162 = ssub.s32 %s9, 1
      %p163 = scmp.lt.s32.totalorder %s14, 1
      %s164 = scalar_select %p163, %s14, 1
      %s165 = smul.addr %s164, 3
      %s166 = smul.addr %s165, 8
      %s167 = scalar_lea.vmem %s0, %s166
      %p168 = pneg %p35
      %p169 = pneg %p32
      %p170 = scmp.lt.s32.totalorder %s14, 1
      %s171 = scalar_select %p170, %s14, 1
      %s172 = smul.addr %s171, 3
      %s173 = smul.addr %s172, 8
      %s174 = scalar_lea.vmem %s1, %s173
      %p175 = pneg %p61
      %p176 = pneg %p58
      %p177 = scmp.lt.s32.totalorder %s14, 1
      %s178 = scalar_select %p177, %s14, 1
      %s179 = smul.addr %s178, 2
      %s180 = smul.addr %s179, 8
      %s181 = scalar_lea.vmem %s2, %s180
      %p182 = pneg %p87
      %p183 = pneg %p84
      %p184 = pneg %p113
      %p185 = pneg %p110
      %p186 = scmp.lt.s32.totalorder %s14, 1
      %s187 = scalar_select %p186, %s14, 1
      %s188 = smul.addr %s187, 2
      %s189 = smul.addr %s188, 8
      %s190 = scalar_lea.vmem %s3, %s189
      %p191 = scmp.lt.s32.totalorder %s14, 1
      %s192 = scalar_select %p191, %s14, 1
      %s193 = smul.addr %s192, 3
      %s194 = smul.addr %s193, 8
      %s195 = scalar_lea.vmem %s0, %s194
      %p196 = scmp.lt.s32.totalorder %s14, 1
      %s197 = scalar_select %p196, %s14, 1
      %s198 = smul.addr %s197, 3
      %s199 = smul.addr %s198, 8
      %s200 = scalar_lea.vmem %s1, %s199
      %p201 = scmp.lt.s32.totalorder %s14, 1
      %s202 = scalar_select %p201, %s14, 1
      %s203 = smul.addr %s202, 2
      %s204 = smul.addr %s203, 8
      %s205 = scalar_lea.vmem %s2, %s204
      %p206 = scmp.lt.s32.totalorder %s14, 1
      %s207 = scalar_select %p206, %s14, 1
      %s208 = smul.addr %s207, 2
      %s209 = smul.addr %s208, 8
      %s210 = scalar_lea.vmem %s3, %s209
      %v211 = vld [vmem:[%s195] sm:$0xff]
      %v212 = vld [vmem:[%s195 + $0x8] sm:$0xff]
      %v213 = vld [vmem:[%s195 + $0x10] sm:$0xff]
      %v214 = vld [vmem:[%s200] sm:$0xff]
      %v215 = vld [vmem:[%s200 + $0x8] sm:$0xff]
      %v216 = vld [vmem:[%s200 + $0x10] sm:$0xff]
      %v217 = vld [vmem:[%s205] sm:$0xff]
      %v218 = vld [vmem:[%s205 + $0x8] sm:$0xff]
      %219 = vxpose.xlu0.b32.start [1/16] %v211, 128
      %220 = vxpose.xlu0.b32.cont [2/16] %v212, 128
      %221 = vxpose.xlu0.b32.cont [3/16] %v213, 128
      %222 = vxpose.xlu0.b32.cont [4/16] 0.0, 128
      %223 = vxpose.xlu0.b32.cont [5/16] 0.0, 128
      %224 = vxpose.xlu0.b32.cont [6/16] 0.0, 128
      %225 = vxpose.xlu0.b32.cont [7/16] 0.0, 128
      %226 = vxpose.xlu0.b32.cont [8/16] 0.0, 128
      %227 = vxpose.xlu0.b32.cont [9/16] 0.0, 128
      %228 = vxpose.xlu0.b32.cont [10/16] 0.0, 128
      %229 = vxpose.xlu0.b32.cont [11/16] 0.0, 128
      %230 = vxpose.xlu0.b32.cont [12/16] 0.0, 128
      %231 = vxpose.xlu0.b32.cont [13/16] 0.0, 128
      %232 = vxpose.xlu0.b32.cont [14/16] 0.0, 128
      %233 = vxpose.xlu0.b32.cont [15/16] 0.0, 128
      %234 = vxpose.xlu0.b32.end [16/16] 0.0, 128
      %v235 = vpop.trf.xlu0
      %v236 = vpop.trf.xlu0
      %v237 = vpop.trf.xlu0
      %v238 = vpop.trf.xlu0
      %v239 = vpop.trf.xlu0
      %v240 = vpop.trf.xlu0
      %v241 = vpop.trf.xlu0
      %v242 = vpop.trf.xlu0
      %v243 = vpop.trf.xlu0
      %v244 = vpop.trf.xlu0
      %v245 = vpop.trf.xlu0
      %v246 = vpop.trf.xlu0
      %v247 = vpop.trf.xlu0
      %v248 = vpop.trf.xlu0
      %v249 = vpop.trf.xlu0
      %v250 = vpop.trf.xlu0
      %vm251 = vcmask 195584
      %v253 = vsel %vm251, %v235, 0
      %v256 = vsel %vm251, %v236, 0
      %v259 = vsel %vm251, %v237, 0
      %v262 = vsel %vm251, %v238, 0
      %v265 = vsel %vm251, %v239, 0
      %v268 = vsel %vm251, %v240, 0
      %v271 = vsel %vm251, %v241, 0
      %v274 = vsel %vm251, %v242, 0
      %v277 = vsel %vm251, %v243, 0
      %v280 = vsel %vm251, %v244, 0
      %v283 = vsel %vm251, %v245, 0
      %v286 = vsel %vm251, %v246, 0
      %v289 = vsel %vm251, %v247, 0
      %v292 = vsel %vm251, %v248, 0
      %v295 = vsel %vm251, %v249, 0
      %v298 = vsel %vm251, %v250, 0
      %300 = vmatprep.subr.mxu0 0.0
      %301 = vmatpush1.msra.mxu0 %v214
      %302 = vmatprep.subr.mxu0 0.0
      %303 = vmatpush1.msra.mxu0 %v215
      %304 = vmatprep.subr.mxu0 0.0
      %305 = vmatpush1.msra.mxu0 %v216
      %306 = vmatprep.subr.mxu0 0.0
      %307 = vmatpush1.msra.mxu0 0.0
      %308 = vmatprep.subr.mxu0 0.0
      %309 = vmatpush1.msra.mxu0 0.0
      %310 = vmatprep.subr.mxu0 0.0
      %311 = vmatpush1.msra.mxu0 0.0
      %312 = vmatprep.subr.mxu0 0.0
      %313 = vmatpush1.msra.mxu0 0.0
      %314 = vmatprep.subr.mxu0 0.0
      %315 = vmatpush1.msra.mxu0 0.0
      %316 = vmatprep.subr.mxu0 0.0
      %317 = vmatpush1.msra.mxu0 0.0
      %318 = vmatprep.subr.mxu0 0.0
      %319 = vmatpush1.msra.mxu0 0.0
      %320 = vmatprep.subr.mxu0 0.0
      %321 = vmatpush1.msra.mxu0 0.0
      %322 = vmatprep.subr.mxu0 0.0
      %323 = vmatpush1.msra.mxu0 0.0
      %324 = vmatprep.subr.mxu0 0.0
      %325 = vmatpush1.msra.mxu0 0.0
      %326 = vmatprep.subr.mxu0 0.0
      %327 = vmatpush1.msra.mxu0 0.0
      %328 = vmatprep.subr.mxu0 0.0
      %329 = vmatpush1.msra.mxu0 0.0
      %330 = vmatprep.subr.mxu0 0.0
      %331 = vmatpush1.msra.mxu0 0.0
      %332 = vmatprep.subr.mxu0 0.0
      %333 = vmatpush1.msra.mxu0 0.0
      %334 = vmatprep.subr.mxu0 0.0
      %335 = vmatpush1.msra.mxu0 0.0
      %336 = vmatprep.subr.mxu0 0.0
      %337 = vmatpush1.msra.mxu0 0.0
      %338 = vmatprep.subr.mxu0 0.0
      %339 = vmatpush1.msra.mxu0 0.0
      %340 = vmatprep.subr.mxu0 0.0
      %341 = vmatpush1.msra.mxu0 0.0
      %342 = vmatprep.subr.mxu0 0.0
      %343 = vmatpush1.msra.mxu0 0.0
      %344 = vmatprep.subr.mxu0 0.0
      %345 = vmatpush1.msra.mxu0 0.0
      %346 = vmatprep.subr.mxu0 0.0
      %347 = vmatpush1.msra.mxu0 0.0
      %348 = vmatprep.subr.mxu0 0.0
      %349 = vmatpush1.msra.mxu0 0.0
      %350 = vmatprep.subr.mxu0 0.0
      %351 = vmatpush1.msra.mxu0 0.0
      %352 = vmatprep.subr.mxu0 0.0
      %353 = vmatpush1.msra.mxu0 0.0
      %354 = vmatprep.subr.mxu0 0.0
      %355 = vmatpush1.msra.mxu0 0.0
      %356 = vmatprep.subr.mxu0 0.0
      %357 = vmatpush1.msra.mxu0 0.0
      %358 = vmatprep.subr.mxu0 0.0
      %359 = vmatpush1.msra.mxu0 0.0
      %360 = vmatprep.subr.mxu0 0.0
      %361 = vmatpush1.msra.mxu0 0.0
      %362 = vmatprep.subr.mxu0 0.0
      %363 = vmatpush1.msra.mxu0 0.0
      %364 = vmatprep.mubr.f32.mxu0 0.0
      %365 = vmatmul.mubr.f32.gmra.mrb[0].mxu0 %v253
      %v366 = vpop.f32.mrb[0].mxu0
      %v367 = vadd.f32 0.0, %v366
      %v368 = vpop.f32.mrb[0].mxu0
      %369 = vmatprep.mubr.f32.mxu0 0.0
      %370 = vmatmul.mubr.f32.gmra.mrb[0].mxu0 %v256
      %v371 = vpop.f32.mrb[0].mxu0
      %v372 = vadd.f32 0.0, %v371
      %v373 = vpop.f32.mrb[0].mxu0
      %374 = vmatprep.mubr.f32.mxu0 0.0
      %375 = vmatmul.mubr.f32.gmra.mrb[0].mxu0 %v259
      %v376 = vpop.f32.mrb[0].mxu0
      %v377 = vadd.f32 0.0, %v376
      %v378 = vpop.f32.mrb[0].mxu0
      %379 = vmatprep.mubr.f32.mxu0 0.0
      %380 = vmatmul.mubr.f32.gmra.mrb[0].mxu0 %v262
      %v381 = vpop.f32.mrb[0].mxu0
      %v382 = vadd.f32 0.0, %v381
      %v383 = vpop.f32.mrb[0].mxu0
      %384 = vmatprep.mubr.f32.mxu0 0.0
      %385 = vmatmul.mubr.f32.gmra.mrb[0].mxu0 %v265
      %v386 = vpop.f32.mrb[0].mxu0
      %v387 = vadd.f32 0.0, %v386
      %v388 = vpop.f32.mrb[0].mxu0
      %389 = vmatprep.mubr.f32.mxu0 0.0
      %390 = vmatmul.mubr.f32.gmra.mrb[0].mxu0 %v268
      %v391 = vpop.f32.mrb[0].mxu0
      %v392 = vadd.f32 0.0, %v391
      %v393 = vpop.f32.mrb[0].mxu0
      %394 = vmatprep.mubr.f32.mxu0 0.0
      %395 = vmatmul.mubr.f32.gmra.mrb[0].mxu0 %v271
      %v396 = vpop.f32.mrb[0].mxu0
      %v397 = vadd.f32 0.0, %v396
      %v398 = vpop.f32.mrb[0].mxu0
      %399 = vmatprep.mubr.f32.mxu0 0.0
      %400 = vmatmul.mubr.f32.gmra.mrb[0].mxu0 %v274
      %v401 = vpop.f32.mrb[0].mxu0
      %v402 = vadd.f32 0.0, %v401
      %v403 = vpop.f32.mrb[0].mxu0
      %404 = vmatprep.mubr.f32.mxu0 0.0
      %405 = vmatmul.mubr.f32.gmra.mrb[0].mxu0 %v277
      %v406 = vpop.f32.mrb[0].mxu0
      %v407 = vadd.f32 0.0, %v406
      %v408 = vpop.f32.mrb[0].mxu0
      %409 = vmatprep.mubr.f32.mxu0 0.0
      %410 = vmatmul.mubr.f32.gmra.mrb[0].mxu0 %v280
      %v411 = vpop.f32.mrb[0].mxu0
      %v412 = vadd.f32 0.0, %v411
      %v413 = vpop.f32.mrb[0].mxu0
      %414 = vmatprep.mubr.f32.mxu0 0.0
      %415 = vmatmul.mubr.f32.gmra.mrb[0].mxu0 %v283
      %v416 = vpop.f32.mrb[0].mxu0
      %v417 = vadd.f32 0.0, %v416
      %v418 = vpop.f32.mrb[0].mxu0
      %419 = vmatprep.mubr.f32.mxu0 0.0
      %420 = vmatmul.mubr.f32.gmra.mrb[0].mxu0 %v286
      %v421 = vpop.f32.mrb[0].mxu0
      %v422 = vadd.f32 0.0, %v421
      %v423 = vpop.f32.mrb[0].mxu0
      %424 = vmatprep.mubr.f32.mxu0 0.0
      %425 = vmatmul.mubr.f32.gmra.mrb[0].mxu0 %v289
      %v426 = vpop.f32.mrb[0].mxu0
      %v427 = vadd.f32 0.0, %v426
      %v428 = vpop.f32.mrb[0].mxu0
      %429 = vmatprep.mubr.f32.mxu0 0.0
      %430 = vmatmul.mubr.f32.gmra.mrb[0].mxu0 %v292
      %v431 = vpop.f32.mrb[0].mxu0
      %v432 = vadd.f32 0.0, %v431
      %v433 = vpop.f32.mrb[0].mxu0
      %434 = vmatprep.mubr.f32.mxu0 0.0
      %435 = vmatmul.mubr.f32.gmra.mrb[0].mxu0 %v295
      %v436 = vpop.f32.mrb[0].mxu0
      %v437 = vadd.f32 0.0, %v436
      %v438 = vpop.f32.mrb[0].mxu0
      %439 = vmatprep.mubr.f32.mxu0 0.0
      %440 = vmatmul.mubr.f32.gmra.mrb[0].mxu0 %v298
      %v441 = vpop.f32.mrb[0].mxu0
      %v442 = vadd.f32 0.0, %v441
      %v443 = vpop.f32.mrb[0].mxu0
      %444 = vdwg.mxu0
      %445 = vmatprep.subr.mxu0 0.0
      %446 = vmatpush1.msra.mxu0 %v367
      %447 = vmatprep.subr.mxu0 0.0
      %448 = vmatpush1.msra.mxu0 %v372
      %449 = vmatprep.subr.mxu0 0.0
      %450 = vmatpush1.msra.mxu0 %v377
      %451 = vmatprep.subr.mxu0 0.0
      %452 = vmatpush1.msra.mxu0 %v382
      %453 = vmatprep.subr.mxu0 0.0
      %454 = vmatpush1.msra.mxu0 %v387
      %455 = vmatprep.subr.mxu0 0.0
      %456 = vmatpush1.msra.mxu0 %v392
      %457 = vmatprep.subr.mxu0 0.0
      %458 = vmatpush1.msra.mxu0 %v397
      %459 = vmatprep.subr.mxu0 0.0
      %460 = vmatpush1.msra.mxu0 %v402
      %461 = vmatprep.subr.mxu0 0.0
      %462 = vmatpush1.msra.mxu0 %v407
      %463 = vmatprep.subr.mxu0 0.0
      %464 = vmatpush1.msra.mxu0 %v412
      %465 = vmatprep.subr.mxu0 0.0
      %466 = vmatpush1.msra.mxu0 %v417
      %467 = vmatprep.subr.mxu0 0.0
      %468 = vmatpush1.msra.mxu0 %v422
      %469 = vmatprep.subr.mxu0 0.0
      %470 = vmatpush1.msra.mxu0 %v427
      %471 = vmatprep.subr.mxu0 0.0
      %472 = vmatpush1.msra.mxu0 %v432
      %473 = vmatprep.subr.mxu0 0.0
      %474 = vmatpush1.msra.mxu0 %v437
      %475 = vmatprep.subr.mxu0 0.0
      %476 = vmatpush1.msra.mxu0 %v442
      %477 = vmatprep.subr.mxu0 0.0
      %478 = vmatpush1.msra.mxu0 0.0
      %479 = vmatprep.subr.mxu0 0.0
      %480 = vmatpush1.msra.mxu0 0.0
      %481 = vmatprep.subr.mxu0 0.0
      %482 = vmatpush1.msra.mxu0 0.0
      %483 = vmatprep.subr.mxu0 0.0
      %484 = vmatpush1.msra.mxu0 0.0
      %485 = vmatprep.subr.mxu0 0.0
      %486 = vmatpush1.msra.mxu0 0.0
      %487 = vmatprep.subr.mxu0 0.0
      %488 = vmatpush1.msra.mxu0 0.0
      %489 = vmatprep.subr.mxu0 0.0
      %490 = vmatpush1.msra.mxu0 0.0
      %491 = vmatprep.subr.mxu0 0.0
      %492 = vmatpush1.msra.mxu0 0.0
      %493 = vmatprep.subr.mxu0 0.0
      %494 = vmatpush1.msra.mxu0 0.0
      %495 = vmatprep.subr.mxu0 0.0
      %496 = vmatpush1.msra.mxu0 0.0
      %497 = vmatprep.subr.mxu0 0.0
      %498 = vmatpush1.msra.mxu0 0.0
      %499 = vmatprep.subr.mxu0 0.0
      %500 = vmatpush1.msra.mxu0 0.0
      %501 = vmatprep.subr.mxu0 0.0
      %502 = vmatpush1.msra.mxu0 0.0
      %503 = vmatprep.subr.mxu0 0.0
      %504 = vmatpush1.msra.mxu0 0.0
      %505 = vmatprep.subr.mxu0 0.0
      %506 = vmatpush1.msra.mxu0 0.0
      %507 = vmatprep.subr.mxu0 0.0
      %508 = vmatpush1.msra.mxu0 0.0
      %509 = vmatprep.mubr.f32.mxu0 0.0
      %510 = vmatmul.mubr.f32.gmra.mrb[0].mxu0 %v217
      %v511 = vpop.f32.mrb[0].mxu0
      %v512 = vadd.f32 0.0, %v511
      %v513 = vpop.f32.mrb[0].mxu0
      %514 = vmatprep.mubr.f32.mxu0 0.0
      %515 = vmatmul.mubr.f32.gmra.mrb[0].mxu0 %v218
      %v516 = vpop.f32.mrb[0].mxu0
      %v517 = vadd.f32 0.0, %v516
      %v518 = vpop.f32.mrb[0].mxu0
      %519 = vdwg.mxu0
      %v520 = vmul.f32 %v217, %v217
      %v521 = vmul.f32 %v218, %v218
      %522 = vadd.xlane.f32.xlu0 %v520
      %v523 = vpop.xlane.xlu0 %522
      %524 = vadd.xlane.f32.xlu0 %v521
      %v525 = vpop.xlane.xlu0 %524
      %v526 = vmul.f32 %v367, %v367
      %v527 = vmul.f32 %v372, %v372
      %v528 = vmul.f32 %v377, %v377
      %v529 = vmul.f32 %v382, %v382
      %v530 = vmul.f32 %v387, %v387
      %v531 = vmul.f32 %v392, %v392
      %v532 = vmul.f32 %v397, %v397
      %v533 = vmul.f32 %v402, %v402
      %v534 = vmul.f32 %v407, %v407
      %v535 = vmul.f32 %v412, %v412
      %v536 = vmul.f32 %v417, %v417
      %v537 = vmul.f32 %v422, %v422
      %v538 = vmul.f32 %v427, %v427
      %v539 = vmul.f32 %v432, %v432
      %v540 = vmul.f32 %v437, %v437
      %v541 = vmul.f32 %v442, %v442
      %v542 = vadd.f32 %v526, %v527
      %v543 = vadd.f32 %v542, %v528
      %v544 = vadd.f32 %v543, %v529
      %v545 = vadd.f32 %v544, %v530
      %v546 = vadd.f32 %v545, %v531
      %v547 = vadd.f32 %v546, %v532
      %v548 = vadd.f32 %v547, %v533
      %v549 = vadd.f32 %v548, %v534
      %v550 = vadd.f32 %v549, %v535
      %v551 = vadd.f32 %v550, %v536
      %v552 = vadd.f32 %v551, %v537
      %v553 = vadd.f32 %v552, %v538
      %v554 = vadd.f32 %v553, %v539
      %v555 = vadd.f32 %v554, %v540
      %v556 = vadd.f32 %v555, %v541
      %v557 = vrot.slane %v556, 4
      %v558 = vadd.f32 %v556, %v557
      %v559 = vrot.slane %v558, 2
      %v560 = vadd.f32 %v558, %v559
      %v561 = vrot.slane %v560, 1
      %v562 = vadd.f32 %v560, %v561
      %v563 = vmul.f32 %v512, 2.0
      %v564 = vmul.f32 %v517, 2.0
      %v565 = vsub.f32 %v563, %v523
      %v566 = vsub.f32 %v564, %v525
      %v567 = vsub.f32 %v565, %v562
      %v568 = vsub.f32 %v566, %v562
      %569 = vst [vmem:[%s210] sm:$0xff] %v567
      %570 = vst [vmem:[%s210 + $0x8] sm:$0xff] %v568
      %p571 = scmp.lt.s32.totalorder %s14, 1
      %s572 = scalar_select %p571, %s14, 1
      %s573 = smul.addr %s572, 2
      %s574 = smul.addr %s573, 8
      %s575 = scalar_lea.vmem %s3, %s574
      // Predicated region
      $region33: #{_token_proto_core.1} parent=31 // pred_check
        %p576 = pneg %p110
      $region34: #{_token_proto_core.1} parent=31 // pred_check_branch
        %578 = sbr.rel (%p576) target = $region36
      $region35: #{_token_proto_core.1} parent=31 // pred_region
        _
      $region36: #{_token_proto_core.1} parent=31 // pred_fallthru
        _
    $region32: #{_token_proto_core.1} parent=5 // pred_fallthru
      _
    %p579 = scmp.le.s32.totalorder 2, %s9
    // Predicated region
    $region37: #{_token_proto_core.1} parent=5 // pred_check
      %p580 = pneg %p579
    $region38: #{_token_proto_core.1} parent=5 // pred_check_branch
      %582 = sbr.rel (%p580) target = $region40
    $region39: #{_token_proto_core.1} parent=5 // pred_region
      %s583 = ssub.s32 %s9, 2
      // Predicated region
      $region41: #{_token_proto_core.1} parent=39 // pred_check
        %p584 = pneg %p116
      $region42: #{_token_proto_core.1} parent=39 // pred_check_branch
        %586 = sbr.rel (%p584) target = $region44
      $region43: #{_token_proto_core.1} parent=39 // pred_region
        %p587 = scmp.lt.s32.totalorder %s15, 1
        %s588 = scalar_select %p587, %s15, 1
        %s589 = smul.addr %s588, 2
        %s590 = smul.addr %s589, 8
        %s591 = scalar_lea.vmem %s3, %s590
      $region44: #{_token_proto_core.1} parent=39 // pred_fallthru
        _
    $region40: #{_token_proto_core.1} parent=5 // pred_fallthru
      _
  $region6: #{_token_proto_core.1} parent=0 // loop_footer
    %s13 = sadd.s32 1, %s9
  $region7: #{_token_proto_core.1} parent=0 // loop_footer_branch
    %8 = sbr.rel target = $region3
  $region8: #{_token_proto_core.1} parent=0 // loop_exit
    _

</llo_original>
